<compile_context>
chip_gen: v6e
topology: v6e:2x2x1
jax: 0.10.0
libtpu: 0.0.40
codegen_flags: <defaults>
</compile_context>

<pallas_src>
import functools

import numpy as np
import jax
import jax.numpy as jnp
from jax.experimental import pallas as pl
from jax.experimental.pallas import tpu as pltpu


def _pos_enc_eval_kernel(x_ref, pe_ref, o_ref, *, ts):
    # x_ref : (ts, B, D) tile of the input
    # pe_ref: (S_pad, 1, D) full resident PE table (padded to a tile multiple)
    start = pl.multiple_of(pl.program_id(0) * ts, ts)
    pe_tile = pe_ref[pl.ds(start, ts), :, :]          # (ts, 1, D)
    o_ref[...] = (x_ref[...] + pe_tile).astype(o_ref.dtype)


def _pos_enc_train_kernel(x_ref, pe_ref, bits_ref, o_ref, *, ts, p):
    start = pl.multiple_of(pl.program_id(0) * ts, ts)
    pe_tile = pe_ref[pl.ds(start, ts), :, :]          # (ts, 1, D)
    y = x_ref[...] + pe_tile                          # broadcast add (VPU)

    # Inverted dropout: keep iff bits >= p * 2^32 (pure integer compare),
    # scale survivors by 1/(1-p).
    thresh = jnp.uint32(min(int(round(p * (1 << 32))), (1 << 32) - 1))
    keep = bits_ref[...] >= thresh
    scale = jnp.asarray(1.0 / (1.0 - p), dtype=y.dtype)
    zero = jnp.asarray(0.0, dtype=y.dtype)
    o_ref[...] = jnp.where(keep, y * scale, zero).astype(o_ref.dtype)


class PositionalEncoding:
    """JAX/Pallas port of the PyTorch PositionalEncoding module."""

    def __init__(self, d_model, dropout=0.1, max_len=768):
        self.p = float(dropout)
        self.d_model = d_model
        self.max_len = max_len
        # Deterministic sinusoidal table, exactly as in the PyTorch __init__.
        pe = np.zeros((max_len, d_model), dtype=np.float32)
        pos = np.arange(0, max_len, dtype=np.float32)[:, None]
        div = np.exp(
            np.arange(0, d_model, 2, dtype=np.float32) * (-np.log(10000.0) / d_model)
        )
        pe[:, 0::2] = np.sin(pos * div)
        pe[:, 1::2] = np.cos(pos * div)
        # (max_len, 1, d_model) — matches .unsqueeze(0).transpose(0, 1)
        self.pe = jnp.asarray(pe[:, None, :])

    def __call__(self, x, *, training=False, rng=None):
        S, B, D = x.shape
        assert D == self.d_model and S <= self.max_len
        use_dropout = training and self.p > 0.0

        itemsize = jnp.dtype(x.dtype).itemsize

        # Tile the sequence axis so each x/out block is ~4 MiB (mem-bound:
        # big blocks amortize the ~0.35 us per-grid-step overhead).
        target_block_bytes = 4 << 20
        bytes_per_row = max(B * D * itemsize, 1)
        ts = int(max(1, min(S, target_block_bytes // bytes_per_row)))
        num_tiles = int(pl.cdiv(S, ts))
        s_pad = num_tiles * ts

        # PE: slice to S, cast to the activation dtype (halves PE DMA bytes for
        # bf16 runs, keeps the add in x's dtype), pad seq axis to the tiled
        # extent so the in-kernel slice of the resident table never reads OOB.
        pe = self.pe[:S].astype(x.dtype)
        if s_pad != S:
            pe = jnp.concatenate(
                [pe, jnp.zeros((s_pad - S, 1, D), dtype=pe.dtype)], axis=0
            )

        tile_spec = pl.BlockSpec((ts, B, D), lambda i: (i, 0, 0))
        pe_spec = pl.BlockSpec((s_pad, 1, D), lambda i: (0, 0, 0))  # VMEM-resident

        # VMEM budget: double-buffered x/out (+bits) blocks + resident PE.
        n_streams = 3 if use_dropout else 2
        block_bytes = ts * B * D * itemsize
        pe_bytes = s_pad * 1 * D * itemsize
        need = 2 * n_streams * block_bytes + pe_bytes
        vmem_limit = int(min(max(need + (4 << 20), 16 << 20), 56 << 20))

        compiler_params = pltpu.CompilerParams(
            dimension_semantics=("parallel",),   # no cross-step carry -> safe;
            vmem_limit_bytes=vmem_limit,         # lets v7x use both TCs
        )
        out_shape = jax.ShapeDtypeStruct(x.shape, x.dtype)

        if use_dropout:
            if rng is None:
                rng = jax.random.PRNGKey(0)
            # TODO(synk): RNG stream differs from torch.nn.Dropout; the
            # distributional semantics (Bernoulli keep, 1/(1-p) scaling) match.
            bits = jax.random.bits(rng, (S, B, D), dtype=jnp.uint32)
            kernel = functools.partial(_pos_enc_train_kernel, ts=ts, p=self.p)
            return pl.pallas_call(
                kernel,
                grid=(num_tiles,),
                in_specs=[tile_spec, pe_spec,
                          pl.BlockSpec((ts, B, D), lambda i: (i, 0, 0))],
                out_specs=pl.BlockSpec((ts, B, D), lambda i: (i, 0, 0)),
                out_shape=out_shape,
                compiler_params=compiler_params,
            )(x, pe, bits)

        kernel = functools.partial(_pos_enc_eval_kernel, ts=ts)
        return pl.pallas_call(
            kernel,
            grid=(num_tiles,),
            in_specs=[tile_spec, pe_spec],
            out_specs=pl.BlockSpec((ts, B, D), lambda i: (i, 0, 0)),
            out_shape=out_shape,
            compiler_params=compiler_params,
        )(x, pe)


if __name__ == "__main__":
    d_model = 32
    seq_len = 8
    batch = 2

    key = jax.random.PRNGKey(0)
    x = jax.random.normal(key, (seq_len, batch, d_model), dtype=jnp.float32)

    mod = PositionalEncoding(d_model=d_model, dropout=0.1, max_len=768)

    # Eval mode (dropout = identity): must match x + pe[:S].
    y_eval = mod(x, training=False)
    jax.block_until_ready(y_eval)
    ref = np.asarray(x) + np.asarray(mod.pe[:seq_len])
    np.testing.assert_allclose(np.asarray(y_eval), ref, rtol=1e-6, atol=1e-6)

    # Training mode: exercise the in-kernel dropout path.
    y_train = mod(x, training=True, rng=jax.random.PRNGKey(123))
    jax.block_until_ready(y_train)
    assert y_train.shape == x.shape
    yt = np.asarray(y_train)
    assert np.all(np.isfinite(yt))
    # Every element is either dropped (0) or (x + pe) scaled by 1/(1-p).
    scaled = ref / (1.0 - 0.1)
    assert np.all(np.isclose(yt, scaled, rtol=1e-5, atol=1e-6) | (yt == 0.0))

    print("KERNEL_OK")
</pallas_src>

<mosaic_0001>
module attributes {stable_mosaic.version = 11 : i64} {
  func.func @_pos_enc_eval_kernel(%arg0: i32, %arg1: memref<8x2x32xf32, #tpu.memory_space<vmem>>, %arg2: memref<8x1x32xf32, #tpu.memory_space<vmem>>, %arg3: memref<8x2x32xf32, #tpu.memory_space<vmem>>) attributes {dimension_semantics = [#tpu.dimension_semantics<parallel>], iteration_bounds = array<i64: 1>, scalar_prefetch = 0 : i64, scratch_operands = 0 : i64, tpu.core_type = #tpu.core_type<tc>, window_params = [{transform_indices = @transform_0, window_bounds = array<i64: 8, 2, 32>}, {pipeline_mode = #tpu.pipeline_mode<synchronous>, transform_indices = @transform_1, window_bounds = array<i64: 8, 1, 32>}, {transform_indices = @transform_2, window_bounds = array<i64: 8, 2, 32>}]} {
    %c8_i32 = arith.constant 8 : i32
    %0 = arith.muli %arg0, %c8_i32 : i32
    %1 = tpu.assume_multiple %0, 8 : i32
    %2 = arith.index_cast %1 : i32 to index
    %c0 = arith.constant 0 : index
    %c0_0 = arith.constant 0 : index
    %3 = vector.load %arg2[%2, %c0, %c0_0] : memref<8x1x32xf32, #tpu.memory_space<vmem>>, vector<8x1x32xf32>
    %c0_1 = arith.constant 0 : index
    %c0_2 = arith.constant 0 : index
    %c0_3 = arith.constant 0 : index
    %4 = vector.load %arg1[%c0_1, %c0_2, %c0_3] : memref<8x2x32xf32, #tpu.memory_space<vmem>>, vector<8x2x32xf32>
    %5 = vector.broadcast %3 : vector<8x1x32xf32> to vector<8x2x32xf32>
    %6 = arith.addf %4, %5 : vector<8x2x32xf32>
    %c0_4 = arith.constant 0 : index
    %c0_5 = arith.constant 0 : index
    %c0_6 = arith.constant 0 : index
    %7 = vector.load %arg3[%c0_4, %c0_5, %c0_6] : memref<8x2x32xf32, #tpu.memory_space<vmem>>, vector<8x2x32xf32>
    tpu.vector_store %arg3[%c0_4, %c0_5, %c0_6], %6 {strides = array<i32>} : memref<8x2x32xf32, #tpu.memory_space<vmem>>, vector<8x2x32xf32>,
    return
  }
  func.func @transform_0(%arg0: i32) -> (i32, i32, i32) {
    %c0_i32 = arith.constant 0 : i32
    %c0_i32_0 = arith.constant 0 : i32
    %c0_i32_1 = arith.constant 0 : i32
    return %arg0, %c0_i32, %c0_i32_0 : i32, i32, i32
  }
  func.func @transform_1(%arg0: i32) -> (i32, i32, i32) {
    %c0_i32 = arith.constant 0 : i32
    %c0_i32_0 = arith.constant 0 : i32
    %c0_i32_1 = arith.constant 0 : i32
    %c0_i32_2 = arith.constant 0 : i32
    return %c0_i32, %c0_i32_0, %c0_i32_1 : i32, i32, i32
  }
  func.func @transform_2(%arg0: i32) -> (i32, i32, i32) {
    %c0_i32 = arith.constant 0 : i32
    %c0_i32_0 = arith.constant 0 : i32
    %c0_i32_1 = arith.constant 0 : i32
    return %arg0, %c0_i32, %c0_i32_0 : i32, i32, i32
  }
}

</mosaic_0001>

<llo_original>
// kernel: tpu_custom_call.1
$region0: #{tpu_custom_call.1}
  #allocation0 [shape = 'u32[]', space=smem, size = 0x4, offset = 0x4, fixed_abs, tag = 'smem constant byte address 0x4 - core index']
  #allocation1 [shape = 'u32[144,128]{1,0:T(1,128)}', space=vmem, size = 0x12000, scoped, tag = 'internal scratch']
  %s0 = inlined_call_operand.hbm [shape: f32[8,2,32], index: 0, kind: input, shape index: {}]
  %s1 = inlined_call_operand.hbm [shape: f32[8,1,32], index: 1, kind: input, shape index: {}]
  %s2 = inlined_call_operand.hbm [shape: f32[8,2,32], index: 2, kind: output, shape index: {}]
  %s3 = sld [smem:[#allocation0]]
  $region26: #{tpu_custom_call.1} parent=0
    _
  %s5 = ssub.s32 1, %s3
  %s6 = scalar_select 0, %s5, %s3
  $region1: #{tpu_custom_call.1} parent=0
    #allocation2 [shape = 'u8[8192]{0}', space=vmem, size = 0x2000, scoped, tag = 'input window, operand 0, single buffered']
    #allocation3 [shape = 's32[1]{0}', space=sflag, size = 0x4, scoped, tag = 'scoped memory for tpu_custom_call.1']
    #allocation4 [shape = 's32[1]{0}', space=sflag, size = 0x4, scoped, tag = 'scoped memory for tpu_custom_call.1']
    #allocation5 [shape = 'u8[4096]{0}', space=vmem, size = 0x1000, scoped, tag = 'input window, operand 1, single buffered']
    #allocation6 [shape = 's32[1]{0}', space=sflag, size = 0x4, scoped, tag = 'scoped memory for tpu_custom_call.1']
    #allocation7 [shape = 'u8[8192]{0}', space=vmem, size = 0x2000, scoped, tag = 'output window, operand 0, single buffered']
    %7 = vsyncpa [#allocation3], 0
    %8 = vsyncpa [#allocation6], 0
    %9 = vsyncpa [#allocation4], 0
    // Predicated region
    $region2: #{tpu_custom_call.1} parent=1 // pred_check
      _
    $region3: #{tpu_custom_call.1} parent=1 // pred_check_branch
      %11 = sbr.rel (0) target = $region5
    $region4: #{tpu_custom_call.1} parent=1 // pred_region
      %s13 = ssub.s32 256, 256
      %14 = vsyncadd [#allocation3], %s13
      %s15 = sshll.u32 [#allocation2], 4
      %s16 = int_to_ptr.vmem [resolvable:$true] %s15
      %21 = dma.hbm_to_vmem [thread:$0]  %s0, 256, %s16, [#allocation3], 32, 32, 2
    $region5: #{tpu_custom_call.1} parent=1 // pred_fallthru
      _
    // Predicated region
    $region6: #{tpu_custom_call.1} parent=1 // pred_check
      _
    $region7: #{tpu_custom_call.1} parent=1 // pred_check_branch
      %23 = sbr.rel (0) target = $region9
    $region8: #{tpu_custom_call.1} parent=1 // pred_region
      %s25 = ssub.s32 128, 128
      %26 = vsyncadd [#allocation6], %s25
      %s27 = sshll.u32 [#allocation5], 4
      %s28 = int_to_ptr.vmem [resolvable:$true] %s27
      %33 = dma.hbm_to_vmem [thread:$0]  %s1, 128, %s28, [#allocation6], 16, 16, 1
    $region9: #{tpu_custom_call.1} parent=1 // pred_fallthru
      _
    // Predicated region
    $region10: #{tpu_custom_call.1} parent=1 // pred_check
      _
    $region11: #{tpu_custom_call.1} parent=1 // pred_check_branch
      %35 = sbr.rel (0) target = $region13
    $region12: #{tpu_custom_call.1} parent=1 // pred_region
      %36 = dma.done [#allocation3], 256
    $region13: #{tpu_custom_call.1} parent=1 // pred_fallthru
      _
    // Predicated region
    $region14: #{tpu_custom_call.1} parent=1 // pred_check
      _
    $region15: #{tpu_custom_call.1} parent=1 // pred_check_branch
      %38 = sbr.rel (0) target = $region17
    $region16: #{tpu_custom_call.1} parent=1 // pred_region
      %39 = dma.done [#allocation6], 128
    $region17: #{tpu_custom_call.1} parent=1 // pred_fallthru
      _
    %s40 = smul.u32 0, 8
    %s41 = scalar_lea.vmem [#allocation5], %s40
    %v42 = vld [vmem:[%s41] sm:$0x1]
    %v43 = vld [vmem:[%s41 + $0x1] sm:$0x1]
    %v44 = vld [vmem:[%s41 + $0x2] sm:$0x1]
    %v45 = vld [vmem:[%s41 + $0x3] sm:$0x1]
    %v46 = vld [vmem:[%s41 + $0x4] sm:$0x1]
    %v47 = vld [vmem:[%s41 + $0x5] sm:$0x1]
    %v48 = vld [vmem:[%s41 + $0x6] sm:$0x1]
    %v49 = vld [vmem:[%s41 + $0x7] sm:$0x1]
    %v50 = vld [vmem:[#allocation2] sm:$0x3]
    %v51 = vld [vmem:[#allocation2 + $0x2] sm:$0x3]
    %v52 = vld [vmem:[#allocation2 + $0x4] sm:$0x3]
    %v53 = vld [vmem:[#allocation2 + $0x6] sm:$0x3]
    %v54 = vld [vmem:[#allocation2 + $0x8] sm:$0x3]
    %v55 = vld [vmem:[#allocation2 + $0xa] sm:$0x3]
    %v56 = vld [vmem:[#allocation2 + $0xc] sm:$0x3]
    %v57 = vld [vmem:[#allocation2 + $0xe] sm:$0x3]
    %v66 = vlaneseq
    %v67 = vshrl.u32 %v66, 7
    %v68 = vsub.s32 0, %v67
    %v69 = vrot.slane %v42, %v68
    %v70 = vlaneseq
    %v71 = vshrl.u32 %v70, 7
    %v72 = vsub.s32 0, %v71
    %v73 = vrot.slane %v43, %v72
    %v74 = vlaneseq
    %v75 = vshrl.u32 %v74, 7
    %v76 = vsub.s32 0, %v75
    %v77 = vrot.slane %v44, %v76
    %v78 = vlaneseq
    %v79 = vshrl.u32 %v78, 7
    %v80 = vsub.s32 0, %v79
    %v81 = vrot.slane %v45, %v80
    %v82 = vlaneseq
    %v83 = vshrl.u32 %v82, 7
    %v84 = vsub.s32 0, %v83
    %v85 = vrot.slane %v46, %v84
    %v86 = vlaneseq
    %v87 = vshrl.u32 %v86, 7
    %v88 = vsub.s32 0, %v87
    %v89 = vrot.slane %v47, %v88
    %v90 = vlaneseq
    %v91 = vshrl.u32 %v90, 7
    %v92 = vsub.s32 0, %v91
    %v93 = vrot.slane %v48, %v92
    %v94 = vlaneseq
    %v95 = vshrl.u32 %v94, 7
    %v96 = vsub.s32 0, %v95
    %v97 = vrot.slane %v49, %v96
    %v106 = vadd.f32 %v50, %v69
    %v107 = vadd.f32 %v51, %v73
    %v108 = vadd.f32 %v52, %v77
    %v109 = vadd.f32 %v53, %v81
    %v110 = vadd.f32 %v54, %v85
    %v111 = vadd.f32 %v55, %v89
    %v112 = vadd.f32 %v56, %v93
    %v113 = vadd.f32 %v57, %v97
    %vm114 = vcmask 254976
    %115 = vst.msk [vmem:[#allocation7] sm:$0x3] %vm114, %v106
    %116 = vst.msk [vmem:[#allocation7 + $0x2] sm:$0x3] %vm114, %v107
    %117 = vst.msk [vmem:[#allocation7 + $0x4] sm:$0x3] %vm114, %v108
    %118 = vst.msk [vmem:[#allocation7 + $0x6] sm:$0x3] %vm114, %v109
    %119 = vst.msk [vmem:[#allocation7 + $0x8] sm:$0x3] %vm114, %v110
    %120 = vst.msk [vmem:[#allocation7 + $0xa] sm:$0x3] %vm114, %v111
    %121 = vst.msk [vmem:[#allocation7 + $0xc] sm:$0x3] %vm114, %v112
    %122 = vst.msk [vmem:[#allocation7 + $0xe] sm:$0x3] %vm114, %v113
    // Predicated region
    $region18: #{tpu_custom_call.1} parent=1 // pred_check
      _
    $region19: #{tpu_custom_call.1} parent=1 // pred_check_branch
      %124 = sbr.rel (0) target = $region21
    $region20: #{tpu_custom_call.1} parent=1 // pred_region
      %s126 = ssub.s32 256, 256
      %127 = vsyncadd [#allocation4], %s126
      %s128 = sshll.u32 [#allocation7], 4
      %s129 = int_to_ptr.vmem [resolvable:$true] %s128
      %134 = dma.vmem_to_hbm [thread:$0]  %s129, 256, %s2, [#allocation4], 32, 32, 2
    $region21: #{tpu_custom_call.1} parent=1 // pred_fallthru
      _
    // Predicated region
    $region22: #{tpu_custom_call.1} parent=1 // pred_check
      _
    $region23: #{tpu_custom_call.1} parent=1 // pred_check_branch
      %136 = sbr.rel (0) target = $region25
    $region24: #{tpu_custom_call.1} parent=1 // pred_region
      %137 = dma.done [#allocation4], 256
    $region25: #{tpu_custom_call.1} parent=1 // pred_fallthru
      _
    %138 = vsyncpa [#allocation3], 1
    %139 = vsyncpa [#allocation6], 1
    %140 = vsyncpa [#allocation4], 1

</llo_original>
